<compile_context>
chip_gen: v5e
topology: v5e:2x2
jax: 0.10.0
libtpu: 0.0.40
codegen_flags: <defaults>
</compile_context>

<pallas_src>
import functools

import jax
import jax.numpy as jnp
from jax.experimental import pallas as pl
from jax.experimental.pallas import tpu as pltpu


# ----------------------------------------------------------------------------
# generation-aware hardware query (VMEM capacity, megacore)
# ----------------------------------------------------------------------------
def _query_tpu():
    vmem_cap = 64 * 1024 * 1024          # conservative default (v7x-sized)
    two_cores = False
    try:
        info = pltpu.get_tpu_info()
        vmem_cap = int(getattr(info, "vmem_capacity_bytes", vmem_cap))
    except Exception:
        pass
    try:
        kind = jax.devices()[0].device_kind.lower()
        two_cores = ("v7" in kind) or ("7x" in kind)   # 2 TensorCores / chip
    except Exception:
        pass
    return vmem_cap, two_cores


_VMEM_CAP, _TWO_CORES = _query_tpu()
_VMEM_LIMIT = min(int(_VMEM_CAP * 0.75), 100 * 1024 * 1024)
_VMEM_BUDGET = int(_VMEM_CAP * 0.60)     # headroom for compiler scratch


# ----------------------------------------------------------------------------
# small helpers
# ----------------------------------------------------------------------------
def _round_up(n, m):
    return ((n + m - 1) // m) * m


def _pick_row_tile(rows, cap=512):
    """Row tile for the input projection: multiple of 8, <= cap.
    Prefer an exact divisor (no padding) unless it would be degenerate."""
    best = 0
    for d in range(8, min(rows, cap) + 1, 8):
        if rows % d == 0:
            best = d
    if best >= min(rows, 256):
        return best, rows
    return cap, _round_up(rows, cap)


def _pick_col_tile(cols, cap=512):
    """Lane tile (multiple of 128) along the 3*Hp axis."""
    if cols <= cap:
        return cols
    best = 128
    for d in range(128, cap + 1, 128):
        if cols % d == 0:
            best = d
    return best


def _pick_time_chunk(T, max_tc):
    """Prefer an exact divisor of T in [max_tc/2, max_tc]; otherwise pad T."""
    max_tc = max(1, min(max_tc, T))
    for d in range(max_tc, max(max_tc // 2, 1) - 1, -1):
        if T % d == 0:
            return d, T
    return max_tc, _round_up(T, max_tc)


def _pick_batch_block(Bp, cap, two_cores):
    """Largest multiple-of-8 divisor of Bp <= cap; on dual-TC parts ensure
    >= 2 batch blocks so the 'parallel' axis spans both cores."""
    if two_cores and Bp >= 16:
        cap = min(cap, max(8, (Bp // 2) // 8 * 8))
    best = 8
    for bb in range(8, min(Bp, cap) + 1, 8):
        if Bp % bb == 0:
            best = bb
    return best


def _spec(shape, index_map, *, single_buffer=False):
    """BlockSpec; grid-invariant blocks may request single buffering."""
    if single_buffer and hasattr(pl, "Buffered"):
        try:
            return pl.BlockSpec(shape, index_map, pipeline_mode=pl.Buffered(1))
        except TypeError:
            pass
    return pl.BlockSpec(shape, index_map)


# ----------------------------------------------------------------------------
# Kernel 1: batched input projection for ALL time steps (big matmul).
#   Gi = x2d @ W_ih_fused + (b_ih + [b_hh_r, b_hh_z, 0])      (rows, 3*Hp)
# ----------------------------------------------------------------------------
def _input_proj_kernel(x_ref, w_ref, b_ref, gi_ref):
    gi_ref[...] = (
        jnp.dot(x_ref[...], w_ref[...], preferred_element_type=jnp.float32)
        + b_ref[...]
    ).astype(gi_ref.dtype)


# ----------------------------------------------------------------------------
# Kernel 2: sequential GRU recurrence over time chunks.
#   grid = (batch_blocks ["parallel"], time_chunks ["arbitrary"])
#   Per step:  gh = h @ W_hh_fused  (single lane-dense MXU push) + gate math.
# ----------------------------------------------------------------------------
def _gru_recurrent_kernel(gi_ref, whh_ref, bhn_ref, out_ref, h_scr, *, unroll):
    t_blk = pl.program_id(1)

    @pl.when(t_blk == 0)
    def _():
        # h_0 = 0 (PyTorch default); also clears state of the previous batch block.
        h_scr[...] = jnp.zeros_like(h_scr)

    tc = gi_ref.shape[0]
    Hp = out_ref.shape[-1]
    whh = whh_ref[...]                 # (Hp, 3*Hp) resident, matmul dtype
    bhn = bhn_ref[...]                 # (1, Hp)    f32

    def step(t, h):
        gi = gi_ref[t].astype(jnp.float32)                     # (BB, 3*Hp)
        gh = jnp.dot(h.astype(whh.dtype), whh,
                     preferred_element_type=jnp.float32)       # (BB, 3*Hp)
        rz = jax.nn.sigmoid(gi[:, :2 * Hp] + gh[:, :2 * Hp])   # fused r|z
        r = rz[:, :Hp]
        z = rz[:, Hp:]
        n = jnp.tanh(gi[:, 2 * Hp:] + r * (gh[:, 2 * Hp:] + bhn))
        h_new = n + z * (h - n)                                # == (1-z)*n + z*h
        out_ref[t] = h_new.astype(out_ref.dtype)
        return h_new

    h = jax.lax.fori_loop(0, tc, step, h_scr[...], unroll=unroll)
    h_scr[...] = h                     # carry across time chunks


# ----------------------------------------------------------------------------
# One GRU layer: projection pallas_call + recurrence pallas_call
# ----------------------------------------------------------------------------
def gru_layer(x, p, *, out_dtype=jnp.float32, t_chunk=None, batch_block=None):
    """x: (T, B, Din) -> (out (T, B, H), h_last (B, H)), dtype `out_dtype`."""
    T, B, Din = x.shape
    H, Hp = p["H"], p["Hp"]
    H3 = 3 * Hp
    mm_dtype = p["wih"].dtype
    gi_dtype = mm_dtype                # bf16 Gi storage on the bf16 path

    gi_bytes = jnp.dtype(gi_dtype).itemsize
    out_bytes = jnp.dtype(out_dtype).itemsize
    w_bytes = jnp.dtype(mm_dtype).itemsize

    # ---- tile / chunk selection (generation-aware) ---------------------------
    Bp = _round_up(B, 8)
    if batch_block is not None:
        BB = batch_block
        assert Bp % BB == 0 and BB % 8 == 0
    else:
        BB = _pick_batch_block(Bp, 256, _TWO_CORES)
    if t_chunk is not None:
        tc, T_pad = t_chunk, _round_up(T, t_chunk)
    else:
        tc, T_pad = _pick_time_chunk(T, 16)

    def recur_vmem(tc_, BB_):
        return (2 * tc_ * BB_ * H3 * gi_bytes        # Gi chunk   (double-buffered)
                + 2 * tc_ * BB_ * Hp * out_bytes     # out chunk  (double-buffered)
                + Hp * H3 * w_bytes                  # resident W_hh (single-buffered)
                + BB_ * Hp * 4 + Hp * 4)             # h carry + b_hh_n

    while recur_vmem(tc, BB) > _VMEM_BUDGET:
        if batch_block is None and BB > 8:
            BB = _pick_batch_block(Bp, BB - 8, _TWO_CORES)
        elif t_chunk is None and tc > 1:
            tc, T_pad = _pick_time_chunk(T, max(1, tc // 2))
        else:
            break

    # ---- pad input to hardware-friendly shapes (time & batch) ----------------
    xp = jnp.zeros((T_pad, Bp, Din), x.dtype).at[:T, :B, :].set(x)

    # ---- 1) input projection for all time steps ------------------------------
    rows = T_pad * Bp
    rp, rows_pad = _pick_row_tile(rows)
    tn = _pick_col_tile(H3)
    x2d = xp.reshape(rows, Din).astype(mm_dtype)
    if rows_pad != rows:
        x2d = jnp.pad(x2d, ((0, rows_pad - rows), (0, 0)))

    gi2d = pl.pallas_call(
        _input_proj_kernel,
        out_shape=jax.ShapeDtypeStruct((rows_pad, H3), gi_dtype),
        grid_spec=pltpu.PrefetchScalarGridSpec(
            num_scalar_prefetch=0,
            grid=(rows_pad // rp, H3 // tn),
            in_specs=[
                pl.BlockSpec((rp, Din), lambda i, j: (i, 0)),    # x rows
                pl.BlockSpec((Din, tn), lambda i, j: (0, j)),    # W_ih^T slab
                pl.BlockSpec((1, tn), lambda i, j: (0, j)),      # folded bias
            ],
            out_specs=pl.BlockSpec((rp, tn), lambda i, j: (i, j)),
        ),
        compiler_params=pltpu.CompilerParams(
            dimension_semantics=("parallel", "parallel"),
            vmem_limit_bytes=_VMEM_LIMIT),
    )(x2d, p["wih"], p["gi_bias"])
    gi = gi2d[:rows].reshape(T_pad, Bp, H3)

    # ---- 2) serial recurrence over (batch blocks ||, time chunks seq) --------
    unroll = True if Hp <= 512 else 2
    kernel = functools.partial(_gru_recurrent_kernel, unroll=unroll)

    def run(single_buffer):
        return pl.pallas_call(
            kernel,
            out_shape=jax.ShapeDtypeStruct((T_pad, Bp, Hp), out_dtype),
            grid_spec=pltpu.PrefetchScalarGridSpec(
                num_scalar_prefetch=0,
                grid=(Bp // BB, T_pad // tc),
                in_specs=[
                    pl.BlockSpec((tc, BB, H3), lambda b, t: (t, b, 0)),   # Gi chunk
                    _spec((Hp, H3), lambda b, t: (0, 0),
                          single_buffer=single_buffer),                   # W_hh^T
                    _spec((1, Hp), lambda b, t: (0, 0),
                          single_buffer=single_buffer),                   # b_hh_n
                ],
                out_specs=pl.BlockSpec((tc, BB, Hp), lambda b, t: (t, b, 0)),
                scratch_shapes=[pltpu.VMEM((BB, Hp), jnp.float32)],       # h carry
            ),
            compiler_params=pltpu.CompilerParams(
                dimension_semantics=("parallel", "arbitrary"),
                vmem_limit_bytes=_VMEM_LIMIT),
        )(gi, p["whh"], p["bhh_n"])

    try:
        out_p = run(True)      # single-buffer grid-invariant weight blocks
    except Exception:
        out_p = run(False)     # fall back to default double buffering

    out = out_p[:T, :B, :H]
    h_last = out_p[T - 1, :B, :H]        # last real step == final hidden state
    return out, h_last


# ----------------------------------------------------------------------------
# Encoder forward (glue in plain JAX): permute + stacked GRU layers
# ----------------------------------------------------------------------------
def encoder_forward(X, prepared_params, *, t_chunk=None, batch_block=None):
    """X: (bs, num_steps, input_size) -> (output (T,B,H) f32, state (L,B,H) f32)."""
    x = jnp.transpose(X, (1, 0, 2))                       # (T, B, D)
    num_layers = len(prepared_params)
    states = []
    for li, p in enumerate(prepared_params):
        final = (li == num_layers - 1)
        out_dtype = jnp.float32 if final else p["wih"].dtype  # bf16 between layers
        x, h_last = gru_layer(x, p, out_dtype=out_dtype,
                              t_chunk=t_chunk, batch_block=batch_block)
        # TODO(synk): inter-layer dropout not applied (module default dropout=0.0)
        states.append(h_last.astype(jnp.float32))
    return x, jnp.stack(states, axis=0)


# ----------------------------------------------------------------------------
# Parameter init (PyTorch GRU: U(-1/sqrt(H), 1/sqrt(H))) + kernel-layout prep
# ----------------------------------------------------------------------------
def init_gru_params(key, input_size, hidden_size, num_layers):
    """Raw, PyTorch-equivalent params: (wih (3,Din,H), whh (3,H,H), bih (3,H), bhh (3,H))."""
    params = []
    bound = 1.0 / float(jnp.sqrt(jnp.float32(hidden_size)))
    d_in = input_size
    for _ in range(num_layers):
        key, k1, k2, k3, k4 = jax.random.split(key, 5)
        wih = jax.random.uniform(k1, (3, d_in, hidden_size), minval=-bound,
                                 maxval=bound, dtype=jnp.float32)
        whh = jax.random.uniform(k2, (3, hidden_size, hidden_size), minval=-bound,
                                 maxval=bound, dtype=jnp.float32)
        bih = jax.random.uniform(k3, (3, hidden_size), minval=-bound,
                                 maxval=bound, dtype=jnp.float32)
        bhh = jax.random.uniform(k4, (3, hidden_size), minval=-bound,
                                 maxval=bound, dtype=jnp.float32)
        params.append((wih, whh, bih, bhh))
        d_in = hidden_size
    return params


def prepare_gru_layer(raw, matmul_dtype=jnp.bfloat16):
    """Fuse gates, fold biases, pad H -> multiple of 128, cast MXU operands."""
    wih, whh, bih, bhh = raw
    Din, H = wih.shape[1], wih.shape[2]
    Hp = _round_up(H, 128)

    wih_f = jnp.zeros((Din, 3 * Hp), jnp.float32)
    whh_f = jnp.zeros((Hp, 3 * Hp), jnp.float32)
    gi_bias = jnp.zeros((1, 3 * Hp), jnp.float32)
    bhh_n = jnp.zeros((1, Hp), jnp.float32)
    for g in range(3):                      # gate order r, z, n (PyTorch)
        wih_f = wih_f.at[:, g * Hp:g * Hp + H].set(wih[g])
        whh_f = whh_f.at[:H, g * Hp:g * Hp + H].set(whh[g])
    # fold b_ih (all gates) + b_hh (r, z only) into the precomputed Gi bias;
    # b_hh_n must stay inside the r * (...) term -> kept separate.
    gi_bias = gi_bias.at[0, 0 * Hp:0 * Hp + H].set(bih[0] + bhh[0])
    gi_bias = gi_bias.at[0, 1 * Hp:1 * Hp + H].set(bih[1] + bhh[1])
    gi_bias = gi_bias.at[0, 2 * Hp:2 * Hp + H].set(bih[2])
    bhh_n = bhh_n.at[0, :H].set(bhh[2])

    return dict(wih=wih_f.astype(matmul_dtype), whh=whh_f.astype(matmul_dtype),
                gi_bias=gi_bias, bhh_n=bhh_n, H=H, Hp=Hp, Din=Din)


def prepare_encoder_params(raw_params, matmul_dtype=jnp.bfloat16):
    return [prepare_gru_layer(r, matmul_dtype) for r in raw_params]


# ----------------------------------------------------------------------------
# Pure-JAX reference (for correctness check)
# ----------------------------------------------------------------------------
def encoder_forward_ref(X, raw_params):
    x = jnp.transpose(X, (1, 0, 2)).astype(jnp.float32)
    states = []
    for (wih, whh, bih, bhh) in raw_params:
        B = x.shape[1]
        H = whh.shape[-1]
        h0 = jnp.zeros((B, H), jnp.float32)

        def step(h, xt, wih=wih, whh=whh, bih=bih, bhh=bhh):
            r = jax.nn.sigmoid(xt @ wih[0] + bih[0] + h @ whh[0] + bhh[0])
            z = jax.nn.sigmoid(xt @ wih[1] + bih[1] + h @ whh[1] + bhh[1])
            n = jnp.tanh(xt @ wih[2] + bih[2] + r * (h @ whh[2] + bhh[2]))
            h_new = (1.0 - z) * n + z * h
            return h_new, h_new

        h_last, outs = jax.lax.scan(step, h0, x)
        x = outs
        states.append(h_last)
    return x, jnp.stack(states, axis=0)


if __name__ == "__main__":
    batch, num_steps = 2, 8
    input_size, hidden_size, num_layers = 16, 32, 2

    key = jax.random.PRNGKey(0)
    k_x, k_p, k_x2 = jax.random.split(key, 3)
    X = jax.random.normal(k_x, (batch, num_steps, input_size), dtype=jnp.float32)
    raw = init_gru_params(k_p, input_size, hidden_size, num_layers)

    out_ref, st_ref = encoder_forward_ref(X, raw)
    # Kernel and reference matmuls run at the TPU's default (bf16-class) MXU
    # precision -> tolerances are bf16-accumulation scale.
    TOL = dict(atol=5e-2, rtol=5e-2)

    # 1) default bf16-MXU path, multiple time chunks (t_chunk=4 -> 2 chunks)
    prep_bf16 = prepare_encoder_params(raw, jnp.bfloat16)
    output, state = encoder_forward(X, prep_bf16, t_chunk=4)
    output = jax.block_until_ready(output)
    state = jax.block_until_ready(state)
    assert output.shape == (num_steps, batch, hidden_size)
    assert state.shape == (num_layers, batch, hidden_size)
    assert jnp.allclose(output, out_ref, **TOL)
    assert jnp.allclose(state, st_ref, **TOL)

    # 2) float32-operand path (auto-picked time chunk)
    prep_f32 = prepare_encoder_params(raw, jnp.float32)
    out32, st32 = encoder_forward(X, prep_f32)
    out32 = jax.block_until_ready(out32)
    assert jnp.allclose(out32, out_ref, **TOL)
    assert jnp.allclose(st32, st_ref, **TOL)

    # 3) larger batch exercising the batch-parallel grid axis (2 batch blocks)
    Xb = jax.random.normal(k_x2, (10, num_steps, input_size), dtype=jnp.float32)
    outb_ref, stb_ref = encoder_forward_ref(Xb, raw)
    outb, stb = encoder_forward(Xb, prep_bf16, t_chunk=4, batch_block=8)
    outb = jax.block_until_ready(outb)
    assert outb.shape == (num_steps, 10, hidden_size)
    assert jnp.allclose(outb, outb_ref, **TOL)
    assert jnp.allclose(stb, stb_ref, **TOL)

    print("KERNEL_OK")
</pallas_src>

<mosaic_0001>
module attributes {stable_mosaic.version = 11 : i64} {
  func.func @_input_proj_kernel(%arg0: i32, %arg1: i32, %arg2: memref<64x16xbf16, #tpu.memory_space<vmem>>, %arg3: memref<16x384xbf16, #tpu.memory_space<vmem>>, %arg4: memref<1x384xf32, #tpu.memory_space<vmem>>, %arg5: memref<64x384xbf16, #tpu.memory_space<vmem>>) attributes {dimension_semantics = [#tpu.dimension_semantics<parallel>, #tpu.dimension_semantics<parallel>], iteration_bounds = array<i64: 1, 1>, scalar_prefetch = 0 : i64, scratch_operands = 0 : i64, tpu.core_type = #tpu.core_type<tc>, window_params = [{transform_indices = @transform_0, window_bounds = array<i64: 64, 16>}, {transform_indices = @transform_1, window_bounds = array<i64: 16, 384>}, {transform_indices = @transform_2, window_bounds = array<i64: 1, 384>}, {transform_indices = @transform_3, window_bounds = array<i64: 64, 384>}]} {
    %c0 = arith.constant 0 : index
    %c0_0 = arith.constant 0 : index
    %0 = vector.load %arg2[%c0, %c0_0] : memref<64x16xbf16, #tpu.memory_space<vmem>>, vector<64x16xbf16>
    %c0_1 = arith.constant 0 : index
    %c0_2 = arith.constant 0 : index
    %1 = vector.load %arg3[%c0_1, %c0_2] : memref<16x384xbf16, #tpu.memory_space<vmem>>, vector<16x384xbf16>
    %cst = arith.constant dense<0.000000e+00> : vector<64x384xf32>
    %2 = tpu.matmul %0, %1, %cst {dimension_numbers = #tpu.dot_dimension_numbers<[1], [0], [0], [1], [0, 0, 1, 1], [], []>} : vector<64x16xbf16>, vector<16x384xbf16>, vector<64x384xf32> -> vector<64x384xf32>
    %c0_3 = arith.constant 0 : index
    %c0_4 = arith.constant 0 : index
    %3 = vector.load %arg4[%c0_3, %c0_4] : memref<1x384xf32, #tpu.memory_space<vmem>>, vector<1x384xf32>
    %4 = vector.broadcast %3 : vector<1x384xf32> to vector<64x384xf32>
    %5 = arith.addf %2, %4 : vector<64x384xf32>
    %6 = arith.truncf %5 : vector<64x384xf32> to vector<64x384xbf16>
    %c0_5 = arith.constant 0 : index
    %c0_6 = arith.constant 0 : index
    %7 = vector.load %arg5[%c0_5, %c0_6] : memref<64x384xbf16, #tpu.memory_space<vmem>>, vector<64x384xbf16>
    tpu.vector_store %arg5[%c0_5, %c0_6], %6 {strides = array<i32>} : memref<64x384xbf16, #tpu.memory_space<vmem>>, vector<64x384xbf16>,
    return
  }
  func.func @transform_0(%arg0: i32, %arg1: i32) -> (i32, i32) {
    %c0_i32 = arith.constant 0 : i32
    %c0_i32_0 = arith.constant 0 : i32
    return %arg0, %c0_i32 : i32, i32
  }
  func.func @transform_1(%arg0: i32, %arg1: i32) -> (i32, i32) {
    %c0_i32 = arith.constant 0 : i32
    %c0_i32_0 = arith.constant 0 : i32
    return %c0_i32, %arg1 : i32, i32
  }
  func.func @transform_2(%arg0: i32, %arg1: i32) -> (i32, i32) {
    %c0_i32 = arith.constant 0 : i32
    %c0_i32_0 = arith.constant 0 : i32
    return %c0_i32, %arg1 : i32, i32
  }
  func.func @transform_3(%arg0: i32, %arg1: i32) -> (i32, i32) {
    %c0_i32 = arith.constant 0 : i32
    return %arg0, %arg1 : i32, i32
  }
}

</mosaic_0001>

<llo_original>
// kernel: tpu_custom_call.1
$region0: #{tpu_custom_call.1}
  #allocation0 [shape = 'u32[]', space=smem, size = 0x4, offset = 0x4, fixed_abs, tag = 'smem constant byte address 0x4 - core index']
  #allocation1 [shape = 'u32[72,128]{1,0:T(1,128)}', space=vmem, size = 0x9000, scoped, tag = 'internal scratch']
  %s0 = inlined_call_operand.vmem [shape: bf16[64,16], index: 0, kind: input, shape index: {}]
  %s1 = inlined_call_operand.vmem [shape: bf16[16,384], index: 1, kind: input, shape index: {}]
  %s2 = inlined_call_operand.vmem [shape: f32[1,384], index: 2, kind: input, shape index: {}]
  %s3 = inlined_call_operand.hbm [shape: bf16[64,384], index: 3, kind: output, shape index: {}]
  %s4 = sld [smem:[#allocation0]]
  $region22: #{tpu_custom_call.1} parent=0
    _
  %s6 = ssub.s32 1, %s4
  %s7 = scalar_select 0, %s6, %s4
  $region1: #{tpu_custom_call.1} parent=0
    #allocation2 [shape = 'u8[49152]{0}', space=vmem, size = 0xc000, scoped, tag = 'output window, operand 0, single buffered']
    #allocation3 [shape = 's32[1]{0}', space=sflag, size = 0x4, scoped, tag = 'scoped memory for tpu_custom_call.1']
    %8 = vsyncpa [#allocation3], 0
    // Predicated region
    $region2: #{tpu_custom_call.1} parent=1 // pred_check
      _
    $region3: #{tpu_custom_call.1} parent=1 // pred_check_branch
      %10 = sbr.rel (0) target = $region5
    $region4: #{tpu_custom_call.1} parent=1 // pred_region
      _
    $region5: #{tpu_custom_call.1} parent=1 // pred_fallthru
      _
    // Predicated region
    $region6: #{tpu_custom_call.1} parent=1 // pred_check
      _
    $region7: #{tpu_custom_call.1} parent=1 // pred_check_branch
      %12 = sbr.rel (0) target = $region9
    $region8: #{tpu_custom_call.1} parent=1 // pred_region
      _
    $region9: #{tpu_custom_call.1} parent=1 // pred_fallthru
      _
    // Predicated region
    $region10: #{tpu_custom_call.1} parent=1 // pred_check
      _
    $region11: #{tpu_custom_call.1} parent=1 // pred_check_branch
      %14 = sbr.rel (0) target = $region13
    $region12: #{tpu_custom_call.1} parent=1 // pred_region
      _
    $region13: #{tpu_custom_call.1} parent=1 // pred_fallthru
      _
    %v16 = vld [vmem:[%s0] sm:$0xf]
    %v17 = vld [vmem:[%s0 + $0x4] sm:$0xf]
    %v18 = vld [vmem:[%s0 + $0x8] sm:$0xf]
    %v19 = vld [vmem:[%s0 + $0xc] sm:$0xf]
    %v20 = vld [vmem:[%s0 + $0x10] sm:$0xf]
    %v21 = vld [vmem:[%s0 + $0x14] sm:$0xf]
    %v22 = vld [vmem:[%s0 + $0x18] sm:$0xf]
    %v23 = vld [vmem:[%s0 + $0x1c] sm:$0xf]
    %v24 = vld [vmem:[%s1] sm:$0xff]
    %v25 = vld [vmem:[%s1 + $0x8] sm:$0xf]
    %v26 = vld [vmem:[%s1 + $0xc] sm:$0xff]
    %v27 = vld [vmem:[%s1 + $0x14] sm:$0xf]
    %v28 = vld [vmem:[%s2] sm:$0x7]
    %v30 = vperm.slane %v28, 0
    %v31 = vperm.slane %v28, 1
    %v32 = vperm.slane %v28, 2
    %v44 = vunpack.c.l.b16 %v16
    %v45 = vunpack.c.l.b16 %v17
    %v46 = vunpack.c.l.b16 %v18
    %v47 = vunpack.c.l.b16 %v19
    %v48 = vunpack.c.l.b16 %v20
    %v49 = vunpack.c.l.b16 %v21
    %v50 = vunpack.c.l.b16 %v22
    %v51 = vunpack.c.l.b16 %v23
    %v52 = vpack.c.b16 %v45, %v44
    %v53 = vpack.c.b16 %v47, %v46
    %v54 = vpack.c.b16 %v49, %v48
    %v55 = vpack.c.b16 %v51, %v50
    %v60 = vunpack.c.l.b16 %v24
    %v61 = vunpack.c.h.b16 %v24
    %v62 = vunpack.c.l.b16 %v25
    %v63 = vunpack.c.l.b16 %v26
    %v64 = vunpack.c.h.b16 %v26
    %v65 = vunpack.c.l.b16 %v27
    %v66 = vpack.c.b16 %v63, %v60
    %v67 = vpack.c.b16 %v64, %v61
    %v68 = vpack.c.b16 %v65, %v62
    %vm72 = vcmask 130048
    %v74 = vsel %vm72, %v52, 0
    %v77 = vsel %vm72, %v53, 0
    %v80 = vsel %vm72, %v54, 0
    %v83 = vsel %vm72, %v55, 0
    %85 = vmatpush.bf16.msra.mxu0 0
    %86 = vmatpush.bf16.msra.mxu0 0
    %87 = vmatpush.bf16.msra.mxu0 0
    %88 = vmatpush.bf16.msra.mxu0 0
    %89 = vmatpush.bf16.msra.mxu0 0
    %90 = vmatpush.bf16.msra.mxu0 0
    %91 = vmatpush.bf16.msra.mxu0 0
    %92 = vmatpush.bf16.msra.mxu0 %v66
    %93 = vmatmul.bf16.gmra.mxu0 %v74
    %v94 = vpop.f32.mrf.mxu0
    %v95 = vadd.f32 %v30, %v94
    %v96 = vpop.f32.mrf.mxu0
    %v97 = vadd.f32 %v30, %v96
    %98 = vmatmul.bf16.gmra.mxu0 %v77
    %v99 = vpop.f32.mrf.mxu0
    %v100 = vadd.f32 %v30, %v99
    %v101 = vpop.f32.mrf.mxu0
    %v102 = vadd.f32 %v30, %v101
    %103 = vmatmul.bf16.gmra.mxu0 %v80
    %v104 = vpop.f32.mrf.mxu0
    %v105 = vadd.f32 %v30, %v104
    %v106 = vpop.f32.mrf.mxu0
    %v107 = vadd.f32 %v30, %v106
    %108 = vmatmul.bf16.gmra.mxu0 %v83
    %v109 = vpop.f32.mrf.mxu0
    %v110 = vadd.f32 %v30, %v109
    %v111 = vpop.f32.mrf.mxu0
    %v112 = vadd.f32 %v30, %v111
    %113 = vdwg.mxu0
    %114 = vmatpush.bf16.msra.mxu0 0
    %115 = vmatpush.bf16.msra.mxu0 0
    %116 = vmatpush.bf16.msra.mxu0 0
    %117 = vmatpush.bf16.msra.mxu0 0
    %118 = vmatpush.bf16.msra.mxu0 0
    %119 = vmatpush.bf16.msra.mxu0 0
    %120 = vmatpush.bf16.msra.mxu0 0
    %121 = vmatpush.bf16.msra.mxu0 %v67
    %122 = vmatmul.bf16.gmra.mxu0 %v74
    %v123 = vpop.f32.mrf.mxu0
    %v124 = vadd.f32 %v31, %v123
    %v125 = vpop.f32.mrf.mxu0
    %v126 = vadd.f32 %v31, %v125
    %127 = vmatmul.bf16.gmra.mxu0 %v77
    %v128 = vpop.f32.mrf.mxu0
    %v129 = vadd.f32 %v31, %v128
    %v130 = vpop.f32.mrf.mxu0
    %v131 = vadd.f32 %v31, %v130
    %132 = vmatmul.bf16.gmra.mxu0 %v80
    %v133 = vpop.f32.mrf.mxu0
    %v134 = vadd.f32 %v31, %v133
    %v135 = vpop.f32.mrf.mxu0
    %v136 = vadd.f32 %v31, %v135
    %137 = vmatmul.bf16.gmra.mxu0 %v83
    %v138 = vpop.f32.mrf.mxu0
    %v139 = vadd.f32 %v31, %v138
    %v140 = vpop.f32.mrf.mxu0
    %v141 = vadd.f32 %v31, %v140
    %142 = vdwg.mxu0
    %143 = vmatpush.bf16.msra.mxu0 0
    %144 = vmatpush.bf16.msra.mxu0 0
    %145 = vmatpush.bf16.msra.mxu0 0
    %146 = vmatpush.bf16.msra.mxu0 0
    %147 = vmatpush.bf16.msra.mxu0 0
    %148 = vmatpush.bf16.msra.mxu0 0
    %149 = vmatpush.bf16.msra.mxu0 0
    %150 = vmatpush.bf16.msra.mxu0 %v68
    %151 = vmatmul.bf16.gmra.mxu0 %v74
    %v152 = vpop.f32.mrf.mxu0
    %v153 = vadd.f32 %v32, %v152
    %v154 = vpop.f32.mrf.mxu0
    %v155 = vadd.f32 %v32, %v154
    %156 = vmatmul.bf16.gmra.mxu0 %v77
    %v157 = vpop.f32.mrf.mxu0
    %v158 = vadd.f32 %v32, %v157
    %v159 = vpop.f32.mrf.mxu0
    %v160 = vadd.f32 %v32, %v159
    %161 = vmatmul.bf16.gmra.mxu0 %v80
    %v162 = vpop.f32.mrf.mxu0
    %v163 = vadd.f32 %v32, %v162
    %v164 = vpop.f32.mrf.mxu0
    %v165 = vadd.f32 %v32, %v164
    %166 = vmatmul.bf16.gmra.mxu0 %v83
    %v167 = vpop.f32.mrf.mxu0
    %v168 = vadd.f32 %v32, %v167
    %v169 = vpop.f32.mrf.mxu0
    %v170 = vadd.f32 %v32, %v169
    %171 = vdwg.mxu0
    %v172 = vpack.c.bf16 %v124, %v95
    %v173 = vpack.c.bf16 %v153, %v153
    %v174 = vpack.c.bf16 %v126, %v97
    %v175 = vpack.c.bf16 %v155, %v155
    %v176 = vpack.c.bf16 %v129, %v100
    %v177 = vpack.c.bf16 %v158, %v158
    %v178 = vpack.c.bf16 %v131, %v102
    %v179 = vpack.c.bf16 %v160, %v160
    %v180 = vpack.c.bf16 %v134, %v105
    %v181 = vpack.c.bf16 %v163, %v163
    %v182 = vpack.c.bf16 %v136, %v107
    %v183 = vpack.c.bf16 %v165, %v165
    %v184 = vpack.c.bf16 %v139, %v110
    %v185 = vpack.c.bf16 %v168, %v168
    %v186 = vpack.c.bf16 %v141, %v112
    %v187 = vpack.c.bf16 %v170, %v170
    %188 = vst [vmem:[#allocation2] sm:$0xff] %v172
    %189 = vst [vmem:[#allocation2 + $0x8] sm:$0xf] %v173
    %190 = vst [vmem:[#allocation2 + $0xc] sm:$0xff] %v174
    %191 = vst [vmem:[#allocation2 + $0x14] sm:$0xf] %v175
    %192 = vst [vmem:[#allocation2 + $0x18] sm:$0xff] %v176
    %193 = vst [vmem:[#allocation2 + $0x20] sm:$0xf] %v177
    %194 = vst [vmem:[#allocation2 + $0x24] sm:$0xff] %v178
    %195 = vst [vmem:[#allocation2 + $0x2c] sm:$0xf] %v179
    %196 = vst [vmem:[#allocation2 + $0x30] sm:$0xff] %v180
    %197 = vst [vmem:[#allocation2 + $0x38] sm:$0xf] %v181
    %198 = vst [vmem:[#allocation2 + $0x3c] sm:$0xff] %v182
    %199 = vst [vmem:[#allocation2 + $0x44] sm:$0xf] %v183
    %200 = vst [vmem:[#allocation2 + $0x48] sm:$0xff] %v184
    %201 = vst [vmem:[#allocation2 + $0x50] sm:$0xf] %v185
    %202 = vst [vmem:[#allocation2 + $0x54] sm:$0xff] %v186
    %203 = vst [vmem:[#allocation2 + $0x5c] sm:$0xf] %v187
    // Predicated region
    $region14: #{tpu_custom_call.1} parent=1 // pred_check
      _
    $region15: #{tpu_custom_call.1} parent=1 // pred_check_branch
      %205 = sbr.rel (0) target = $region17
    $region16: #{tpu_custom_call.1} parent=1 // pred_region
      %207 = vsyncadd [#allocation3], 0
      %s208 = sshll.u32 [#allocation2], 4
      %s209 = int_to_ptr.vmem [resolvable:$true] %s208
      %s210 = sshll.u32 %s3, 4
      %s211 = int_to_ptr.hbm [resolvable:$true] %s210
      %216 = dma.vmem_to_hbm [thread:$0]  %s209, 1536, %s211, [#allocation3], 192, 192, 12
    $region17: #{tpu_custom_call.1} parent=1 // pred_fallthru
      _
    // Predicated region
    $region18: #{tpu_custom_call.1} parent=1 // pred_check
      _
    $region19: #{tpu_custom_call.1} parent=1 // pred_check_branch
      %218 = sbr.rel (0) target = $region21
    $region20: #{tpu_custom_call.1} parent=1 // pred_region
      %220 = dma.done [#allocation3], 1536
    $region21: #{tpu_custom_call.1} parent=1 // pred_fallthru
      _
    %221 = vsyncpa [#allocation3], 1

</llo_original>
